<compile_context>
chip_gen: v5e
topology: v5e:2x2
jax: 0.10.0
libtpu: 0.0.40
codegen_flags: <defaults>
</compile_context>

<pallas_src>
import jax
import jax.numpy as jnp
from jax.experimental import pallas as pl
from jax.experimental.pallas import tpu as pltpu

_LANE = 128


def _round_up(n, m):
    return ((n + m - 1) // m) * m


def _cdiv(a, b):
    return (a + b - 1) // b


def _sublane_multiple(dtype):
    # A vreg packs 32 bits per (sublane, lane) slot: f32 -> 8 rows, bf16 -> 16, int8 -> 32.
    return max(8, 32 // jnp.dtype(dtype).itemsize)


def _pad_to(arr, shape):
    pads = [(0, t - s) for s, t in zip(arr.shape, shape)]
    if all(p == (0, 0) for p in pads):
        return arr
    return jnp.pad(arr, pads)


def _vmem_capacity_bytes():
    try:
        return int(pltpu.get_tpu_info().vmem_capacity_bytes)
    except Exception:
        return 64 * 1024 * 1024  # conservative fallback (v7x per-TC VMEM)


# --------------------------------------------------------------------------- #
# One-time parameter preparation (hoisted out of the forward pass).
# --------------------------------------------------------------------------- #
def prepare_nn2_params(weights, biases, mxu_dtype=None):
    """Pad feature dims to 128 lanes, stack hidden layers, optionally cast to bf16.

    weights: list of (in_i, out_i) matrices (already transposed from torch (out, in)).
    biases:  list of (out_i,) vectors.
    """
    n_layers = len(weights)
    assert n_layers >= 2, "NN2 always has at least the input and output Linear"
    in_n = weights[0].shape[0]
    width = weights[0].shape[1]
    out_n = weights[-1].shape[1]
    n_hidden = n_layers - 2

    in_p = _round_up(in_n, _LANE)
    width_p = _round_up(width, _LANE)
    out_p = _round_up(out_n, _LANE)

    wdt = weights[0].dtype if mxu_dtype is None else jnp.dtype(mxu_dtype)

    w_in = _pad_to(weights[0].astype(wdt), (in_p, width_p))
    b_in = _pad_to(biases[0].astype(jnp.float32), (width_p,)).reshape(1, width_p)
    w_out = _pad_to(weights[-1].astype(wdt), (width_p, out_p))
    b_out = _pad_to(biases[-1].astype(jnp.float32), (out_p,)).reshape(1, out_p)

    if n_hidden > 0:
        w_hid = jnp.stack([_pad_to(w.astype(wdt), (width_p, width_p))
                           for w in weights[1:-1]])
        b_hid = jnp.stack([_pad_to(b.astype(jnp.float32), (width_p,)).reshape(1, width_p)
                           for b in biases[1:-1]])
    else:
        w_hid, b_hid = None, None

    # Pay the pad/stack/cast HBM traffic once, here.
    jax.block_until_ready([a for a in (w_in, b_in, w_hid, b_hid, w_out, b_out)
                           if a is not None])

    return {
        "w_in": w_in, "b_in": b_in, "w_hid": w_hid, "b_hid": b_hid,
        "w_out": w_out, "b_out": b_out,
        "dims": (in_n, width, out_n, n_hidden),
        "pads": (in_p, width_p, out_p),
        "mxu_dtype": None if mxu_dtype is None else jnp.dtype(mxu_dtype),
    }


# --------------------------------------------------------------------------- #
# Kernels
# --------------------------------------------------------------------------- #
def _make_resident_kernel(n_hidden, mxu_dtype):
    """All weights VMEM-resident; 1-D grid over batch tiles."""

    def cast(a):
        return a if mxu_dtype is None else a.astype(mxu_dtype)

    if n_hidden == 0:
        def kernel(x_ref, w_in_ref, b_in_ref, w_out_ref, b_out_ref, out_ref):
            h = jnp.dot(cast(x_ref[...]), w_in_ref[...],
                        preferred_element_type=jnp.float32) + b_in_ref[...]
            y = jnp.dot(cast(h), w_out_ref[...],
                        preferred_element_type=jnp.float32) + b_out_ref[...]
            out_ref[...] = y.astype(out_ref.dtype)
        return kernel

    def kernel(x_ref, w_in_ref, b_in_ref, w_hid_ref, b_hid_ref,
               w_out_ref, b_out_ref, out_ref):
        h = jnp.dot(cast(x_ref[...]), w_in_ref[...],
                    preferred_element_type=jnp.float32) + b_in_ref[...]

        def body(l, h):
            return (jnp.dot(cast(h), w_hid_ref[l],
                            preferred_element_type=jnp.float32) + b_hid_ref[l])

        # Bounded unroll: MXU is the binding unit, deeper unroll only raises
        # vreg pressure / compile time.
        h = jax.lax.fori_loop(0, n_hidden, body, h, unroll=min(2, n_hidden))

        y = jnp.dot(cast(h), w_out_ref[...],
                    preferred_element_type=jnp.float32) + b_out_ref[...]
        out_ref[...] = y.astype(out_ref.dtype)

    return kernel


def _make_stream_kernel(mxu_dtype):
    """Weight-streaming path: grid = (batch_tiles, n_hidden); hidden weights are
    streamed one layer at a time (default double buffering overlaps the next
    layer's DMA with the current matmul).  `h` lives in a VMEM f32 scratch."""

    def cast(a):
        return a if mxu_dtype is None else a.astype(mxu_dtype)

    def kernel(x_ref, w_in_ref, b_in_ref, w_hid_ref, b_hid_ref,
               w_out_ref, b_out_ref, out_ref, h_ref):
        l = pl.program_id(1)

        @pl.when(l == 0)
        def _():
            h_ref[...] = (jnp.dot(cast(x_ref[...]), w_in_ref[...],
                                  preferred_element_type=jnp.float32)
                          + b_in_ref[...])

        h_ref[...] = (jnp.dot(cast(h_ref[...]), w_hid_ref[0],
                              preferred_element_type=jnp.float32)
                      + b_hid_ref[0])

        @pl.when(l == pl.num_programs(1) - 1)
        def _():
            y = (jnp.dot(cast(h_ref[...]), w_out_ref[...],
                         preferred_element_type=jnp.float32)
                 + b_out_ref[...])
            out_ref[...] = y.astype(out_ref.dtype)

    return kernel


# --------------------------------------------------------------------------- #
# Forward pass
# --------------------------------------------------------------------------- #
def nn2_forward(x, params, *, tile_b=512, force_stream=False):
    """Fused NN2 forward.  `params` comes from prepare_nn2_params."""
    batch, in_n = x.shape
    in_n_l, width, out_n, n_hidden = params["dims"]
    in_p, width_p, out_p = params["pads"]
    assert in_n == in_n_l, (in_n, in_n_l)
    mxu_dtype = params["mxu_dtype"]

    w_in, b_in = params["w_in"], params["b_in"]
    w_hid, b_hid = params["w_hid"], params["b_hid"]
    w_out, b_out = params["w_out"], params["b_out"]

    x_itemsize = x.dtype.itemsize
    w_itemsize = jnp.dtype(w_in.dtype).itemsize
    sub = _sublane_multiple(x.dtype)          # dtype-aware sublane rounding

    # ---- batch tiling (megacore-friendly: prefer >= 2 tiles when batch allows) --
    batch_s = _round_up(batch, sub)
    tile_b_eff = _round_up(min(tile_b, batch_s), sub)
    if _cdiv(batch_s, tile_b_eff) == 1 and batch_s >= 2 * sub:
        half = _round_up(_cdiv(batch_s, 2), sub)
        tile_b_eff = min(tile_b_eff, half)
    n_tiles = _cdiv(batch_s, tile_b_eff)
    batch_p = n_tiles * tile_b_eff

    x_p = _pad_to(x, (batch_p, in_p))

    # ---- VMEM accounting --------------------------------------------------------
    cap = _vmem_capacity_bytes()
    cap_limit = int(cap * 0.85)               # headroom for Mosaic internal scratch
    headroom = 2 * 1024 * 1024
    min_vmem = 32 * 1024 * 1024

    w_hid_bytes = 0 if w_hid is None else w_hid.size * w_itemsize
    b_hid_bytes = 0 if b_hid is None else b_hid.size * 4
    resident_w_bytes = ((w_in.size + w_out.size) * w_itemsize
                        + (b_in.size + b_out.size) * 4
                        + w_hid_bytes + b_hid_bytes)      # single-buffered (Buffered(1))

    act_bytes = (2 * tile_b_eff * in_p * x_itemsize        # x tile, double-buffered
                 + 2 * tile_b_eff * out_p * x_itemsize     # out tile, double-buffered
                 + 2 * tile_b_eff * width_p * 4)           # live f32 h intermediates

    need_resident = resident_w_bytes + act_bytes + headroom
    need_stream = ((w_in.size + w_out.size) * w_itemsize
                   + (b_in.size + b_out.size) * 4
                   + 2 * (width_p * width_p * w_itemsize + width_p * 4)  # 2 layers in flight
                   + 2 * tile_b_eff * in_p * x_itemsize
                   + 2 * tile_b_eff * out_p * x_itemsize
                   + tile_b_eff * width_p * 4                            # h scratch
                   + headroom)

    use_stream = (force_stream or need_resident > cap_limit) and n_hidden >= 1
    need = need_stream if use_stream else need_resident
    vmem_limit = int(min(cap_limit, max(min_vmem, int(need * 1.2))))

    # ---- cost estimate ----------------------------------------------------------
    flops = 2 * batch_p * (in_p * width_p + n_hidden * width_p * width_p
                           + width_p * out_p)
    bytes_accessed = (batch_p * in_p * x_itemsize + resident_w_bytes
                      + batch_p * out_p * x_itemsize)
    cost = pl.CostEstimate(flops=int(flops), transcendentals=0,
                           bytes_accessed=int(bytes_accessed))

    out_shape = jax.ShapeDtypeStruct((batch_p, out_p), x.dtype)
    single = pl.Buffered(1)                   # constant-index params: no double buffer

    if use_stream:
        grid_spec = pltpu.PrefetchScalarGridSpec(
            num_scalar_prefetch=0,
            grid=(n_tiles, n_hidden),
            in_specs=[
                pl.BlockSpec((tile_b_eff, in_p), lambda i, l: (i, 0)),
                pl.BlockSpec((in_p, width_p), lambda i, l: (0, 0), pipeline_mode=single),
                pl.BlockSpec((1, width_p), lambda i, l: (0, 0), pipeline_mode=single),
                pl.BlockSpec((1, width_p, width_p), lambda i, l: (l, 0, 0)),   # streamed
                pl.BlockSpec((1, 1, width_p), lambda i, l: (l, 0, 0)),         # streamed
                pl.BlockSpec((width_p, out_p), lambda i, l: (0, 0), pipeline_mode=single),
                pl.BlockSpec((1, out_p), lambda i, l: (0, 0), pipeline_mode=single),
            ],
            out_specs=pl.BlockSpec((tile_b_eff, out_p), lambda i, l: (i, 0)),
            scratch_shapes=[pltpu.VMEM((tile_b_eff, width_p), jnp.float32)],
        )
        y_p = pl.pallas_call(
            _make_stream_kernel(mxu_dtype),
            out_shape=out_shape,
            grid_spec=grid_spec,
            compiler_params=pltpu.CompilerParams(
                dimension_semantics=("parallel", "arbitrary"),
                vmem_limit_bytes=vmem_limit,
            ),
            cost_estimate=cost,
        )(x_p, w_in, b_in, w_hid, b_hid, w_out, b_out)

    elif n_hidden > 0:
        grid_spec = pltpu.PrefetchScalarGridSpec(
            num_scalar_prefetch=0,
            grid=(n_tiles,),
            in_specs=[
                pl.BlockSpec((tile_b_eff, in_p), lambda i: (i, 0)),
                pl.BlockSpec((in_p, width_p), lambda i: (0, 0), pipeline_mode=single),
                pl.BlockSpec((1, width_p), lambda i: (0, 0), pipeline_mode=single),
                pl.BlockSpec((n_hidden, width_p, width_p), lambda i: (0, 0, 0),
                             pipeline_mode=single),
                pl.BlockSpec((n_hidden, 1, width_p), lambda i: (0, 0, 0),
                             pipeline_mode=single),
                pl.BlockSpec((width_p, out_p), lambda i: (0, 0), pipeline_mode=single),
                pl.BlockSpec((1, out_p), lambda i: (0, 0), pipeline_mode=single),
            ],
            out_specs=pl.BlockSpec((tile_b_eff, out_p), lambda i: (i, 0)),
        )
        y_p = pl.pallas_call(
            _make_resident_kernel(n_hidden, mxu_dtype),
            out_shape=out_shape,
            grid_spec=grid_spec,
            compiler_params=pltpu.CompilerParams(
                dimension_semantics=("parallel",),
                vmem_limit_bytes=vmem_limit,
            ),
            cost_estimate=cost,
        )(x_p, w_in, b_in, w_hid, b_hid, w_out, b_out)

    else:  # depth == 0: dedicated 5-arg kernel, no dummy hidden-weight buffer
        grid_spec = pltpu.PrefetchScalarGridSpec(
            num_scalar_prefetch=0,
            grid=(n_tiles,),
            in_specs=[
                pl.BlockSpec((tile_b_eff, in_p), lambda i: (i, 0)),
                pl.BlockSpec((in_p, width_p), lambda i: (0, 0), pipeline_mode=single),
                pl.BlockSpec((1, width_p), lambda i: (0, 0), pipeline_mode=single),
                pl.BlockSpec((width_p, out_p), lambda i: (0, 0), pipeline_mode=single),
                pl.BlockSpec((1, out_p), lambda i: (0, 0), pipeline_mode=single),
            ],
            out_specs=pl.BlockSpec((tile_b_eff, out_p), lambda i: (i, 0)),
        )
        y_p = pl.pallas_call(
            _make_resident_kernel(0, mxu_dtype),
            out_shape=out_shape,
            grid_spec=grid_spec,
            compiler_params=pltpu.CompilerParams(
                dimension_semantics=("parallel",),
                vmem_limit_bytes=vmem_limit,
            ),
            cost_estimate=cost,
        )(x_p, w_in, b_in, w_out, b_out)

    return y_p[:batch, :out_n]


# --------------------------------------------------------------------------- #
# Parameter init (mirrors torch.nn.Linear defaults) and pure-JAX reference
# --------------------------------------------------------------------------- #
def init_nn2_params(key, in_N, width, depth, out_N, dtype=jnp.float32):
    layer_dims = [(in_N, width)] + [(width, width)] * depth + [(width, out_N)]
    weights, biases = [], []
    for (fan_in, fan_out) in layer_dims:
        key, kw, kb = jax.random.split(key, 3)
        bound = 1.0 / jnp.sqrt(jnp.asarray(fan_in, dtype=jnp.float32))
        w_t = jax.random.uniform(kw, (fan_out, fan_in), dtype=dtype,
                                 minval=-bound, maxval=bound)
        b = jax.random.uniform(kb, (fan_out,), dtype=dtype,
                               minval=-bound, maxval=bound)
        weights.append(jnp.transpose(w_t))  # torch stores (out, in); kernel wants (in, out)
        biases.append(b)
    return weights, biases


def nn2_reference(x, weights, biases):
    h = x
    for w, b in zip(weights, biases):
        h = h @ w + b
    return h


if __name__ == "__main__":
    # NN2(in_N, width, depth, out_N) — small demo shapes.
    in_N, width, depth, out_N = 4, 32, 2, 3
    batch = 8

    key = jax.random.PRNGKey(0)
    key, kx = jax.random.split(key)
    x = jax.random.normal(kx, (batch, in_N), dtype=jnp.float32)
    weights, biases = init_nn2_params(key, in_N, width, depth, out_N)
    y_ref = nn2_reference(x, weights, biases)

    # 1) resident-weights path, native f32 MXU operands
    params_f32 = prepare_nn2_params(weights, biases)
    y = jax.block_until_ready(nn2_forward(x, params_f32))
    assert y.shape == (batch, out_N), y.shape
    assert jnp.allclose(y, y_ref, atol=1e-4, rtol=1e-4), "f32 resident mismatch"

    # 2) weight-streaming path (depth as inner 'arbitrary' grid axis)
    y_s = jax.block_until_ready(nn2_forward(x, params_f32, force_stream=True))
    assert jnp.allclose(y_s, y_ref, atol=1e-4, rtol=1e-4), "f32 streaming mismatch"

    # 3) bf16 MXU operands (f32 accumulation + f32 bias adds), relaxed tolerance
    params_bf16 = prepare_nn2_params(weights, biases, mxu_dtype=jnp.bfloat16)
    y_b = jax.block_until_ready(nn2_forward(x, params_bf16))
    assert jnp.allclose(y_b, y_ref, atol=1e-1, rtol=1e-1), "bf16 path mismatch"

    print("KERNEL_OK")
</pallas_src>

<mosaic_0001>
module attributes {stable_mosaic.version = 11 : i64} {
  func.func @kernel(%arg0: i32, %arg1: memref<8x128xf32, #tpu.memory_space<vmem>>, %arg2: memref<128x128xf32, #tpu.memory_space<vmem>>, %arg3: memref<1x128xf32, #tpu.memory_space<vmem>>, %arg4: memref<2x128x128xf32, #tpu.memory_space<vmem>>, %arg5: memref<2x1x128xf32, #tpu.memory_space<vmem>>, %arg6: memref<128x128xf32, #tpu.memory_space<vmem>>, %arg7: memref<1x128xf32, #tpu.memory_space<vmem>>, %arg8: memref<8x128xf32, #tpu.memory_space<vmem>>) attributes {dimension_semantics = [#tpu.dimension_semantics<parallel>], iteration_bounds = array<i64: 1>, scalar_prefetch = 0 : i64, scratch_operands = 0 : i64, tpu.core_type = #tpu.core_type<tc>, window_params = [{transform_indices = @transform_0, window_bounds = array<i64: 8, 128>}, {pipeline_mode = #tpu.pipeline_mode<synchronous>, transform_indices = @transform_1, window_bounds = array<i64: 128, 128>}, {pipeline_mode = #tpu.pipeline_mode<synchronous>, transform_indices = @transform_2, window_bounds = array<i64: 1, 128>}, {pipeline_mode = #tpu.pipeline_mode<synchronous>, transform_indices = @transform_3, window_bounds = array<i64: 2, 128, 128>}, {pipeline_mode = #tpu.pipeline_mode<synchronous>, transform_indices = @transform_4, window_bounds = array<i64: 2, 1, 128>}, {pipeline_mode = #tpu.pipeline_mode<synchronous>, transform_indices = @transform_5, window_bounds = array<i64: 128, 128>}, {pipeline_mode = #tpu.pipeline_mode<synchronous>, transform_indices = @transform_6, window_bounds = array<i64: 1, 128>}, {transform_indices = @transform_7, window_bounds = array<i64: 8, 128>}]} {
    %c0 = arith.constant 0 : index
    %c0_0 = arith.constant 0 : index
    %0 = vector.load %arg1[%c0, %c0_0] : memref<8x128xf32, #tpu.memory_space<vmem>>, vector<8x128xf32>
    %c0_1 = arith.constant 0 : index
    %c0_2 = arith.constant 0 : index
    %1 = vector.load %arg2[%c0_1, %c0_2] : memref<128x128xf32, #tpu.memory_space<vmem>>, vector<128x128xf32>
    %cst = arith.constant dense<0.000000e+00> : vector<8x128xf32>
    %2 = tpu.matmul %0, %1, %cst {dimension_numbers = #tpu.dot_dimension_numbers<[1], [0], [0], [1], [0, 0, 1, 1], [], []>} : vector<8x128xf32>, vector<128x128xf32>, vector<8x128xf32> -> vector<8x128xf32>
    %c0_3 = arith.constant 0 : index
    %c0_4 = arith.constant 0 : index
    %3 = vector.load %arg3[%c0_3, %c0_4] : memref<1x128xf32, #tpu.memory_space<vmem>>, vector<1x128xf32>
    %4 = vector.broadcast %3 : vector<1x128xf32> to vector<8x128xf32>
    %5 = arith.addf %2, %4 : vector<8x128xf32>
    %c0_i32 = arith.constant 0 : i32
    %6 = arith.index_cast %c0_i32 : i32 to index
    %c0_5 = arith.constant 0 : index
    %c0_6 = arith.constant 0 : index
    %7 = vector.load %arg4[%6, %c0_5, %c0_6] : memref<2x128x128xf32, #tpu.memory_space<vmem>>, vector<1x128x128xf32>
    %8 = vector.shape_cast %7 : vector<1x128x128xf32> to vector<128x128xf32>
    %cst_7 = arith.constant dense<0.000000e+00> : vector<8x128xf32>
    %9 = tpu.matmul %5, %8, %cst_7 {dimension_numbers = #tpu.dot_dimension_numbers<[1], [0], [0], [1], [0, 0, 1, 1], [], []>} : vector<8x128xf32>, vector<128x128xf32>, vector<8x128xf32> -> vector<8x128xf32>
    %10 = arith.index_cast %c0_i32 : i32 to index
    %c0_8 = arith.constant 0 : index
    %c0_9 = arith.constant 0 : index
    %11 = vector.load %arg5[%10, %c0_8, %c0_9] : memref<2x1x128xf32, #tpu.memory_space<vmem>>, vector<1x1x128xf32>
    %12 = vector.shape_cast %11 : vector<1x1x128xf32> to vector<1x128xf32>
    %13 = vector.broadcast %12 : vector<1x128xf32> to vector<8x128xf32>
    %14 = arith.addf %9, %13 : vector<8x128xf32>
    %c1_i32 = arith.constant 1 : i32
    %15 = arith.index_cast %c1_i32 : i32 to index
    %c0_10 = arith.constant 0 : index
    %c0_11 = arith.constant 0 : index
    %16 = vector.load %arg4[%15, %c0_10, %c0_11] : memref<2x128x128xf32, #tpu.memory_space<vmem>>, vector<1x128x128xf32>
    %17 = vector.shape_cast %16 : vector<1x128x128xf32> to vector<128x128xf32>
    %cst_12 = arith.constant dense<0.000000e+00> : vector<8x128xf32>
    %18 = tpu.matmul %14, %17, %cst_12 {dimension_numbers = #tpu.dot_dimension_numbers<[1], [0], [0], [1], [0, 0, 1, 1], [], []>} : vector<8x128xf32>, vector<128x128xf32>, vector<8x128xf32> -> vector<8x128xf32>
    %19 = arith.index_cast %c1_i32 : i32 to index
    %c0_13 = arith.constant 0 : index
    %c0_14 = arith.constant 0 : index
    %20 = vector.load %arg5[%19, %c0_13, %c0_14] : memref<2x1x128xf32, #tpu.memory_space<vmem>>, vector<1x1x128xf32>
    %21 = vector.shape_cast %20 : vector<1x1x128xf32> to vector<1x128xf32>
    %22 = vector.broadcast %21 : vector<1x128xf32> to vector<8x128xf32>
    %23 = arith.addf %18, %22 : vector<8x128xf32>
    %c2_i32 = arith.constant 2 : i32
    %c0_15 = arith.constant 0 : index
    %c0_16 = arith.constant 0 : index
    %24 = vector.load %arg6[%c0_15, %c0_16] : memref<128x128xf32, #tpu.memory_space<vmem>>, vector<128x128xf32>
    %cst_17 = arith.constant dense<0.000000e+00> : vector<8x128xf32>
    %25 = tpu.matmul %23, %24, %cst_17 {dimension_numbers = #tpu.dot_dimension_numbers<[1], [0], [0], [1], [0, 0, 1, 1], [], []>} : vector<8x128xf32>, vector<128x128xf32>, vector<8x128xf32> -> vector<8x128xf32>
    %c0_18 = arith.constant 0 : index
    %c0_19 = arith.constant 0 : index
    %26 = vector.load %arg7[%c0_18, %c0_19] : memref<1x128xf32, #tpu.memory_space<vmem>>, vector<1x128xf32>
    %27 = vector.broadcast %26 : vector<1x128xf32> to vector<8x128xf32>
    %28 = arith.addf %25, %27 : vector<8x128xf32>
    %c0_20 = arith.constant 0 : index
    %c0_21 = arith.constant 0 : index
    %29 = vector.load %arg8[%c0_20, %c0_21] : memref<8x128xf32, #tpu.memory_space<vmem>>, vector<8x128xf32>
    tpu.vector_store %arg8[%c0_20, %c0_21], %28 {strides = array<i32>} : memref<8x128xf32, #tpu.memory_space<vmem>>, vector<8x128xf32>,
    return
  }
  func.func @transform_0(%arg0: i32) -> (i32, i32) {
    %c0_i32 = arith.constant 0 : i32
    %c0_i32_0 = arith.constant 0 : i32
    return %arg0, %c0_i32 : i32, i32
  }
  func.func @transform_1(%arg0: i32) -> (i32, i32) {
    %c0_i32 = arith.constant 0 : i32
    %c0_i32_0 = arith.constant 0 : i32
    %c0_i32_1 = arith.constant 0 : i32
    return %c0_i32, %c0_i32_0 : i32, i32
  }
  func.func @transform_2(%arg0: i32) -> (i32, i32) {
    %c0_i32 = arith.constant 0 : i32
    %c0_i32_0 = arith.constant 0 : i32
    %c0_i32_1 = arith.constant 0 : i32
    return %c0_i32, %c0_i32_0 : i32, i32
  }
  func.func @transform_3(%arg0: i32) -> (i32, i32, i32) {
    %c0_i32 = arith.constant 0 : i32
    %c0_i32_0 = arith.constant 0 : i32
    %c0_i32_1 = arith.constant 0 : i32
    %c0_i32_2 = arith.constant 0 : i32
    return %c0_i32, %c0_i32_0, %c0_i32_1 : i32, i32, i32
  }
  func.func @transform_4(%arg0: i32) -> (i32, i32, i32) {
    %c0_i32 = arith.constant 0 : i32
    %c0_i32_0 = arith.constant 0 : i32
    %c0_i32_1 = arith.constant 0 : i32
    %c0_i32_2 = arith.constant 0 : i32
    return %c0_i32, %c0_i32_0, %c0_i32_1 : i32, i32, i32
  }
  func.func @transform_5(%arg0: i32) -> (i32, i32) {
    %c0_i32 = arith.constant 0 : i32
    %c0_i32_0 = arith.constant 0 : i32
    %c0_i32_1 = arith.constant 0 : i32
    return %c0_i32, %c0_i32_0 : i32, i32
  }
  func.func @transform_6(%arg0: i32) -> (i32, i32) {
    %c0_i32 = arith.constant 0 : i32
    %c0_i32_0 = arith.constant 0 : i32
    %c0_i32_1 = arith.constant 0 : i32
    return %c0_i32, %c0_i32_0 : i32, i32
  }
  func.func @transform_7(%arg0: i32) -> (i32, i32) {
    %c0_i32 = arith.constant 0 : i32
    %c0_i32_0 = arith.constant 0 : i32
    return %arg0, %c0_i32 : i32, i32
  }
}

</mosaic_0001>

<llo_original>
// kernel: tpu_custom_call.1
$region0: #{tpu_custom_call.1}
  #allocation0 [shape = 'u32[]', space=smem, size = 0x4, offset = 0x4, fixed_abs, tag = 'smem constant byte address 0x4 - core index']
  #allocation1 [shape = 'u32[72,128]{1,0:T(1,128)}', space=vmem, size = 0x9000, scoped, tag = 'internal scratch']
  %s0 = inlined_call_operand.hbm [shape: f32[8,128], index: 0, kind: input, shape index: {}]
  %s1 = inlined_call_operand.hbm [shape: f32[128,128], index: 1, kind: input, shape index: {}]
  %s2 = inlined_call_operand.vmem [shape: f32[1,128], index: 2, kind: input, shape index: {}]
  %s3 = inlined_call_operand.hbm [shape: f32[2,128,128], index: 3, kind: input, shape index: {}]
  %s4 = inlined_call_operand.vmem [shape: f32[2,1,128], index: 4, kind: input, shape index: {}]
  %s5 = inlined_call_operand.hbm [shape: f32[128,128], index: 5, kind: input, shape index: {}]
  %s6 = inlined_call_operand.vmem [shape: f32[1,128], index: 6, kind: input, shape index: {}]
  %s7 = inlined_call_operand.hbm [shape: f32[8,128], index: 7, kind: output, shape index: {}]
  %s8 = sld [smem:[#allocation0]]
  $region54: #{tpu_custom_call.1} parent=0
    _
  %s10 = ssub.s32 1, %s8
  %s11 = scalar_select 0, %s10, %s8
  $region1: #{tpu_custom_call.1} parent=0
    #allocation2 [shape = 'u8[4096]{0}', space=vmem, size = 0x1000, scoped, tag = 'input window, operand 0, single buffered']
    #allocation3 [shape = 's32[1]{0}', space=sflag, size = 0x4, scoped, tag = 'scoped memory for tpu_custom_call.1']
    #allocation4 [shape = 's32[1]{0}', space=sflag, size = 0x4, scoped, tag = 'scoped memory for tpu_custom_call.1']
    #allocation5 [shape = 'u8[65536]{0}', space=vmem, size = 0x10000, scoped, tag = 'input window, operand 1, single buffered']
    #allocation6 [shape = 's32[1]{0}', space=sflag, size = 0x4, scoped, tag = 'scoped memory for tpu_custom_call.1']
    #allocation7 [shape = 'u8[131072]{0}', space=vmem, size = 0x20000, scoped, tag = 'input window, operand 3, single buffered']
    #allocation8 [shape = 'u8[65536]{0}', space=vmem, size = 0x10000, scoped, tag = 'input window, operand 5, single buffered']
    #allocation9 [shape = 's32[1]{0}', space=sflag, size = 0x4, scoped, tag = 'scoped memory for tpu_custom_call.1']
    #allocation10 [shape = 'u8[4096]{0}', space=vmem, size = 0x1000, scoped, tag = 'output window, operand 0, single buffered']
    %12 = vsyncpa [#allocation3], 0
    %13 = vsyncpa [#allocation6], 0
    %14 = vsyncpa [#allocation9], 0
    %15 = vsyncpa [#allocation4], 0
    // Predicated region
    $region2: #{tpu_custom_call.1} parent=1 // pred_check
      _
    $region3: #{tpu_custom_call.1} parent=1 // pred_check_branch
      %17 = sbr.rel (0) target = $region5
    $region4: #{tpu_custom_call.1} parent=1 // pred_region
      %19 = vsyncadd [#allocation3], 0
      %s21 = sshll.u32 %s0, 4
      %s22 = int_to_ptr.hbm [resolvable:$true] %s21
      %s23 = sshll.u32 [#allocation2], 4
      %s24 = int_to_ptr.vmem [resolvable:$true] %s23
      %26 = dma.hbm_to_vmem [thread:$0]  %s22, 128, %s24, [#allocation3]
    $region5: #{tpu_custom_call.1} parent=1 // pred_fallthru
      _
    // Predicated region
    $region6: #{tpu_custom_call.1} parent=1 // pred_check
      _
    $region7: #{tpu_custom_call.1} parent=1 // pred_check_branch
      %28 = sbr.rel (0) target = $region9
    $region8: #{tpu_custom_call.1} parent=1 // pred_region
      %30 = vsyncadd [#allocation6], 0
      %s31 = sshll.u32 %s1, 4
      %s32 = int_to_ptr.hbm [resolvable:$true] %s31
      %s33 = sshll.u32 [#allocation5], 4
      %s34 = int_to_ptr.vmem [resolvable:$true] %s33
      %39 = dma.hbm_to_vmem [thread:$0]  %s32, 2048, %s34, [#allocation6], 128, 128, 8
    $region9: #{tpu_custom_call.1} parent=1 // pred_fallthru
      _
    // Predicated region
    $region10: #{tpu_custom_call.1} parent=1 // pred_check
      _
    $region11: #{tpu_custom_call.1} parent=1 // pred_check_branch
      %41 = sbr.rel (0) target = $region13
    $region12: #{tpu_custom_call.1} parent=1 // pred_region
      _
    $region13: #{tpu_custom_call.1} parent=1 // pred_fallthru
      _
    // Predicated region
    $region14: #{tpu_custom_call.1} parent=1 // pred_check
      _
    $region15: #{tpu_custom_call.1} parent=1 // pred_check_branch
      %43 = sbr.rel (0) target = $region17
    $region16: #{tpu_custom_call.1} parent=1 // pred_region
      %45 = vsyncadd [#allocation6], 0
      %s46 = sshll.u32 %s3, 4
      %s47 = int_to_ptr.hbm [resolvable:$true] %s46
      %s48 = sshll.u32 [#allocation7], 4
      %s49 = int_to_ptr.vmem [resolvable:$true] %s48
      %54 = dma.hbm_to_vmem [thread:$0]  %s47, 4096, %s49, [#allocation6], 128, 128, 8
    $region17: #{tpu_custom_call.1} parent=1 // pred_fallthru
      _
    // Predicated region
    $region18: #{tpu_custom_call.1} parent=1 // pred_check
      _
    $region19: #{tpu_custom_call.1} parent=1 // pred_check_branch
      %56 = sbr.rel (0) target = $region21
    $region20: #{tpu_custom_call.1} parent=1 // pred_region
      _
    $region21: #{tpu_custom_call.1} parent=1 // pred_fallthru
      _
    // Predicated region
    $region22: #{tpu_custom_call.1} parent=1 // pred_check
      _
    $region23: #{tpu_custom_call.1} parent=1 // pred_check_branch
      %58 = sbr.rel (0) target = $region25
    $region24: #{tpu_custom_call.1} parent=1 // pred_region
      %60 = vsyncadd [#allocation9], 0
      %s61 = sshll.u32 %s5, 4
      %s62 = int_to_ptr.hbm [resolvable:$true] %s61
      %s63 = sshll.u32 [#allocation8], 4
      %s64 = int_to_ptr.vmem [resolvable:$true] %s63
      %69 = dma.hbm_to_vmem [thread:$0]  %s62, 2048, %s64, [#allocation9], 128, 128, 8
    $region25: #{tpu_custom_call.1} parent=1 // pred_fallthru
      _
    // Predicated region
    $region26: #{tpu_custom_call.1} parent=1 // pred_check
      _
    $region27: #{tpu_custom_call.1} parent=1 // pred_check_branch
      %71 = sbr.rel (0) target = $region29
    $region28: #{tpu_custom_call.1} parent=1 // pred_region
      _
    $region29: #{tpu_custom_call.1} parent=1 // pred_fallthru
      _
    // Predicated region
    $region30: #{tpu_custom_call.1} parent=1 // pred_check
      _
    $region31: #{tpu_custom_call.1} parent=1 // pred_check_branch
      %73 = sbr.rel (0) target = $region33
    $region32: #{tpu_custom_call.1} parent=1 // pred_region
      %75 = dma.done [#allocation3], 128
    $region33: #{tpu_custom_call.1} parent=1 // pred_fallthru
      _
    // Predicated region
    $region34: #{tpu_custom_call.1} parent=1 // pred_check
      _
    $region35: #{tpu_custom_call.1} parent=1 // pred_check_branch
      %77 = sbr.rel (0) target = $region37
    $region36: #{tpu_custom_call.1} parent=1 // pred_region
      %79 = dma.done [#allocation6], 2048
    $region37: #{tpu_custom_call.1} parent=1 // pred_fallthru
      _
    // Predicated region
    $region38: #{tpu_custom_call.1} parent=1 // pred_check
      _
    $region39: #{tpu_custom_call.1} parent=1 // pred_check_branch
      %81 = sbr.rel (0) target = $region41
    $region40: #{tpu_custom_call.1} parent=1 // pred_region
      %83 = dma.done [#allocation6], 4096
    $region41: #{tpu_custom_call.1} parent=1 // pred_fallthru
      _
    // Predicated region
    $region42: #{tpu_custom_call.1} parent=1 // pred_check
      _
    $region43: #{tpu_custom_call.1} parent=1 // pred_check_branch
      %85 = sbr.rel (0) target = $region45
    $region44: #{tpu_custom_call.1} parent=1 // pred_region
      %87 = dma.done [#allocation9], 2048
    $region45: #{tpu_custom_call.1} parent=1 // pred_fallthru
      _
    %v88 = vld [vmem:[#allocation2] sm:$0xff]
    %v89 = vld [vmem:[#allocation5] sm:$0xff]
    %v90 = vld [vmem:[#allocation5 + $0x8] sm:$0xff]
    %v91 = vld [vmem:[#allocation5 + $0x10] sm:$0xff]
    %v92 = vld [vmem:[#allocation5 + $0x18] sm:$0xff]
    %v93 = vld [vmem:[#allocation5 + $0x20] sm:$0xff]
    %v94 = vld [vmem:[#allocation5 + $0x28] sm:$0xff]
    %v95 = vld [vmem:[#allocation5 + $0x30] sm:$0xff]
    %v96 = vld [vmem:[#allocation5 + $0x38] sm:$0xff]
    %v97 = vld [vmem:[#allocation5 + $0x40] sm:$0xff]
    %v98 = vld [vmem:[#allocation5 + $0x48] sm:$0xff]
    %v99 = vld [vmem:[#allocation5 + $0x50] sm:$0xff]
    %v100 = vld [vmem:[#allocation5 + $0x58] sm:$0xff]
    %v101 = vld [vmem:[#allocation5 + $0x60] sm:$0xff]
    %v102 = vld [vmem:[#allocation5 + $0x68] sm:$0xff]
    %v103 = vld [vmem:[#allocation5 + $0x70] sm:$0xff]
    %v104 = vld [vmem:[#allocation5 + $0x78] sm:$0xff]
    %v105 = vld [vmem:[%s2] sm:$0x1]
    %v107 = vperm.slane %v105, 0
    %109 = vmatpush.msra.mxu0 %v104
    %110 = vmatpush.msra.mxu0 %v103
    %111 = vmatpush.msra.mxu0 %v102
    %112 = vmatpush.msra.mxu0 %v101
    %113 = vmatpush.msra.mxu0 %v100
    %114 = vmatpush.msra.mxu0 %v99
    %115 = vmatpush.msra.mxu0 %v98
    %116 = vmatpush.msra.mxu0 %v97
    %117 = vmatpush.msra.mxu0 %v96
    %118 = vmatpush.msra.mxu0 %v95
    %119 = vmatpush.msra.mxu0 %v94
    %120 = vmatpush.msra.mxu0 %v93
    %121 = vmatpush.msra.mxu0 %v92
    %122 = vmatpush.msra.mxu0 %v91
    %123 = vmatpush.msra.mxu0 %v90
    %124 = vmatpush.msra.mxu0 %v89
    %125 = vmatmul.f32.gmra.mxu0 %v88
    %v126 = vpop.f32.mrf.mxu0
    %v127 = vadd.f32 %v107, %v126
    %128 = vdwg.mxu0
    %v129 = vld [vmem:[#allocation7] sm:$0xff]
    %v130 = vld [vmem:[#allocation7 + $0x8] sm:$0xff]
    %v131 = vld [vmem:[#allocation7 + $0x10] sm:$0xff]
    %v132 = vld [vmem:[#allocation7 + $0x18] sm:$0xff]
    %v133 = vld [vmem:[#allocation7 + $0x20] sm:$0xff]
    %v134 = vld [vmem:[#allocation7 + $0x28] sm:$0xff]
    %v135 = vld [vmem:[#allocation7 + $0x30] sm:$0xff]
    %v136 = vld [vmem:[#allocation7 + $0x38] sm:$0xff]
    %v137 = vld [vmem:[#allocation7 + $0x40] sm:$0xff]
    %v138 = vld [vmem:[#allocation7 + $0x48] sm:$0xff]
    %v139 = vld [vmem:[#allocation7 + $0x50] sm:$0xff]
    %v140 = vld [vmem:[#allocation7 + $0x58] sm:$0xff]
    %v141 = vld [vmem:[#allocation7 + $0x60] sm:$0xff]
    %v142 = vld [vmem:[#allocation7 + $0x68] sm:$0xff]
    %v143 = vld [vmem:[#allocation7 + $0x70] sm:$0xff]
    %v144 = vld [vmem:[#allocation7 + $0x78] sm:$0xff]
    %v145 = vld [vmem:[%s4] sm:$0x1]
    %v147 = vperm.slane %v145, 0
    %149 = vmatpush.msra.mxu0 %v144
    %150 = vmatpush.msra.mxu0 %v143
    %151 = vmatpush.msra.mxu0 %v142
    %152 = vmatpush.msra.mxu0 %v141
    %153 = vmatpush.msra.mxu0 %v140
    %154 = vmatpush.msra.mxu0 %v139
    %155 = vmatpush.msra.mxu0 %v138
    %156 = vmatpush.msra.mxu0 %v137
    %157 = vmatpush.msra.mxu0 %v136
    %158 = vmatpush.msra.mxu0 %v135
    %159 = vmatpush.msra.mxu0 %v134
    %160 = vmatpush.msra.mxu0 %v133
    %161 = vmatpush.msra.mxu0 %v132
    %162 = vmatpush.msra.mxu0 %v131
    %163 = vmatpush.msra.mxu0 %v130
    %164 = vmatpush.msra.mxu0 %v129
    %165 = vmatmul.f32.gmra.mxu0 %v127
    %v166 = vpop.f32.mrf.mxu0
    %v167 = vadd.f32 %v147, %v166
    %168 = vdwg.mxu0
    %s169 = scalar_lea.vmem [#allocation7], 128
    %v170 = vld [vmem:[%s169] sm:$0xff]
    %v171 = vld [vmem:[%s169 + $0x8] sm:$0xff]
    %v172 = vld [vmem:[%s169 + $0x10] sm:$0xff]
    %v173 = vld [vmem:[%s169 + $0x18] sm:$0xff]
    %v174 = vld [vmem:[%s169 + $0x20] sm:$0xff]
    %v175 = vld [vmem:[%s169 + $0x28] sm:$0xff]
    %v176 = vld [vmem:[%s169 + $0x30] sm:$0xff]
    %v177 = vld [vmem:[%s169 + $0x38] sm:$0xff]
    %v178 = vld [vmem:[%s169 + $0x40] sm:$0xff]
    %v179 = vld [vmem:[%s169 + $0x48] sm:$0xff]
    %v180 = vld [vmem:[%s169 + $0x50] sm:$0xff]
    %v181 = vld [vmem:[%s169 + $0x58] sm:$0xff]
    %v182 = vld [vmem:[%s169 + $0x60] sm:$0xff]
    %v183 = vld [vmem:[%s169 + $0x68] sm:$0xff]
    %v184 = vld [vmem:[%s169 + $0x70] sm:$0xff]
    %v185 = vld [vmem:[%s169 + $0x78] sm:$0xff]
    %s186 = scalar_lea.vmem %s4, 1
    %v187 = vld [vmem:[%s186] sm:$0x1]
    %v189 = vperm.slane %v187, 0
    %191 = vmatpush.msra.mxu0 %v185
    %192 = vmatpush.msra.mxu0 %v184
    %193 = vmatpush.msra.mxu0 %v183
    %194 = vmatpush.msra.mxu0 %v182
    %195 = vmatpush.msra.mxu0 %v181
    %196 = vmatpush.msra.mxu0 %v180
    %197 = vmatpush.msra.mxu0 %v179
    %198 = vmatpush.msra.mxu0 %v178
    %199 = vmatpush.msra.mxu0 %v177
    %200 = vmatpush.msra.mxu0 %v176
    %201 = vmatpush.msra.mxu0 %v175
    %202 = vmatpush.msra.mxu0 %v174
    %203 = vmatpush.msra.mxu0 %v173
    %204 = vmatpush.msra.mxu0 %v172
    %205 = vmatpush.msra.mxu0 %v171
    %206 = vmatpush.msra.mxu0 %v170
    %207 = vmatmul.f32.gmra.mxu0 %v167
    %v208 = vpop.f32.mrf.mxu0
    %v209 = vadd.f32 %v189, %v208
    %210 = vdwg.mxu0
    %v211 = vld [vmem:[#allocation8] sm:$0xff]
    %v212 = vld [vmem:[#allocation8 + $0x8] sm:$0xff]
    %v213 = vld [vmem:[#allocation8 + $0x10] sm:$0xff]
    %v214 = vld [vmem:[#allocation8 + $0x18] sm:$0xff]
    %v215 = vld [vmem:[#allocation8 + $0x20] sm:$0xff]
    %v216 = vld [vmem:[#allocation8 + $0x28] sm:$0xff]
    %v217 = vld [vmem:[#allocation8 + $0x30] sm:$0xff]
    %v218 = vld [vmem:[#allocation8 + $0x38] sm:$0xff]
    %v219 = vld [vmem:[#allocation8 + $0x40] sm:$0xff]
    %v220 = vld [vmem:[#allocation8 + $0x48] sm:$0xff]
    %v221 = vld [vmem:[#allocation8 + $0x50] sm:$0xff]
    %v222 = vld [vmem:[#allocation8 + $0x58] sm:$0xff]
    %v223 = vld [vmem:[#allocation8 + $0x60] sm:$0xff]
    %v224 = vld [vmem:[#allocation8 + $0x68] sm:$0xff]
    %v225 = vld [vmem:[#allocation8 + $0x70] sm:$0xff]
    %v226 = vld [vmem:[#allocation8 + $0x78] sm:$0xff]
    %v227 = vld [vmem:[%s6] sm:$0x1]
    %v229 = vperm.slane %v227, 0
    %231 = vmatpush.msra.mxu0 %v226
    %232 = vmatpush.msra.mxu0 %v225
    %233 = vmatpush.msra.mxu0 %v224
    %234 = vmatpush.msra.mxu0 %v223
    %235 = vmatpush.msra.mxu0 %v222
    %236 = vmatpush.msra.mxu0 %v221
    %237 = vmatpush.msra.mxu0 %v220
    %238 = vmatpush.msra.mxu0 %v219
    %239 = vmatpush.msra.mxu0 %v218
    %240 = vmatpush.msra.mxu0 %v217
    %241 = vmatpush.msra.mxu0 %v216
    %242 = vmatpush.msra.mxu0 %v215
    %243 = vmatpush.msra.mxu0 %v214
    %244 = vmatpush.msra.mxu0 %v213
    %245 = vmatpush.msra.mxu0 %v212
    %246 = vmatpush.msra.mxu0 %v211
    %247 = vmatmul.f32.gmra.mxu0 %v209
    %v248 = vpop.f32.mrf.mxu0
    %v249 = vadd.f32 %v229, %v248
    %250 = vdwg.mxu0
    %251 = vst [vmem:[#allocation10] sm:$0xff] %v249
    // Predicated region
    $region46: #{tpu_custom_call.1} parent=1 // pred_check
      _
    $region47: #{tpu_custom_call.1} parent=1 // pred_check_branch
      %253 = sbr.rel (0) target = $region49
    $region48: #{tpu_custom_call.1} parent=1 // pred_region
      %255 = vsyncadd [#allocation4], 0
      %s257 = sshll.u32 [#allocation10], 4
      %s258 = int_to_ptr.vmem [resolvable:$true] %s257
      %s259 = sshll.u32 %s7, 4
      %s260 = int_to_ptr.hbm [resolvable:$true] %s259
      %262 = dma.vmem_to_hbm [thread:$0]  %s258, 128, %s260, [#allocation4]
    $region49: #{tpu_custom_call.1} parent=1 // pred_fallthru
      _
    // Predicated region
    $region50: #{tpu_custom_call.1} parent=1 // pred_check
      _
    $region51: #{tpu_custom_call.1} parent=1 // pred_check_branch
      %264 = sbr.rel (0) target = $region53
    $region52: #{tpu_custom_call.1} parent=1 // pred_region
      %266 = dma.done [#allocation4], 128
    $region53: #{tpu_custom_call.1} parent=1 // pred_fallthru
      _
    %267 = vsyncpa [#allocation3], 1
    %268 = vsyncpa [#allocation6], 1
    %269 = vsyncpa [#allocation9], 1
    %270 = vsyncpa [#allocation4], 1

</llo_original>
